<compile_context>
chip_gen: v5e
topology: v5e:2x2
jax: 0.10.0
libtpu: 0.0.40
codegen_flags: <defaults>
</compile_context>

<pallas_src>
import jax
import jax.numpy as jnp
from jax import lax
from jax.experimental import pallas as pl
from jax.experimental.pallas import tpu as pltpu


def _round_up(x: int, m: int) -> int:
    return -(-x // m) * m


def _vmem_capacity_bytes() -> int:
    """Per-core VMEM capacity; falls back to the smallest (v7x, 64 MiB) part."""
    try:
        info = pltpu.get_tpu_info()
        cap = getattr(info, "vmem_capacity_bytes", None)
        if cap:
            return int(cap)
    except Exception:
        pass
    return 64 * 1024 * 1024


def _step_bytes(tb: int, n_pad: int, nk: int, tc: int, itemsize: int) -> int:
    """Conservative per-grid-step VMEM estimate for the kernel below."""
    # resident (TB, Npad, TC) f32 temporaries; the x[:, :, None, :] view costs ~8x
    resident = 4 * tb * n_pad * tc * 16
    # per-chunk (TB, Npad, nk, TC) compare / cast / pre-reduce temporaries
    chunk = 4 * tb * n_pad * nk * tc * 3
    # double-buffered input block + output block
    io = 2 * tb * n_pad * tc * itemsize + 2 * tb * tc * 4
    return resident + chunk + io


def _pick_tiles(b: int, n: int, c: int, itemsize: int, budget: int):
    """Jointly pick (batch tile, channel tile, k-chunk, padded N) for the budget."""
    # Channel tile: full C unless C is cleanly lane-tileable (multiple of 128).
    tc_cands = [c]
    if c > 128 and c % 128 == 0:
        tc_cands = sorted({t for t in (512, 384, 256, 128) if c % t == 0} | {c},
                          reverse=True)
    tc = None
    for cand in tc_cands:
        if _step_bytes(1, _round_up(n, 8), 8, cand, itemsize) <= budget:
            tc = cand
            break
    if tc is None:
        raise ValueError(
            "FSPool tile search could not fit the minimal (tb=1, nk=8) configuration "
            f"in the per-step VMEM budget ({budget} B) for N={n}, C={c}. "
            "TODO(synk): add an i-axis reduction grid / bitonic-sort variant for "
            "very large sets.")

    # k-chunk: largest 8-aligned chunk (<= 128 keys) that still fits at tb=1.
    nk = 8
    for cand in range(min(128, _round_up(n, 8)), 7, -8):
        if _step_bytes(1, _round_up(n, cand), cand, tc, itemsize) <= budget:
            nk = cand
            break
    n_pad = _round_up(n, nk)

    # Batch tile: largest divisor of B that fits (no %8 constraint on a leading,
    # non-vreg dim); keep >= 2 grid steps for dual-TensorCore parts when possible.
    divs = sorted((d for d in range(1, b + 1) if b % d == 0), reverse=True)
    if c // tc < 2 and b >= 2:
        divs = [d for d in divs if b // d >= 2] or [1]
    tb = next((d for d in divs if _step_bytes(d, n_pad, nk, tc, itemsize) <= budget), 1)
    assert _step_bytes(tb, n_pad, nk, tc, itemsize) <= budget
    return tb, tc, nk, n_pad


def _make_fspool_kernel(nk: int, n_real: int, unroll_chunks: bool):
    """FSPool kernel: native (TB, N, C) layout, rank count + hat-basis interp."""

    def kernel(x_ref, w_ref, o_ref):
        # x_ref: (TB, Npad, TC) dense sets; rows >= n_real are +inf padding.
        # w_ref: (P+1, TC)      piecewise weight knots, lane-dense along channels.
        # o_ref: (TB, 1, TC)    pooled output.
        tb, npad, tc = x_ref.shape
        p = w_ref.shape[0] - 1
        num_chunks = npad // nk

        # Compares stay in the input dtype (bf16 inputs halve VALU work on
        # v6e/v7x); only the rank accumulator and the final reduce are f32.
        x_cmp = x_ref[...]                                      # (TB, Npad, TC)
        xi = x_cmp[:, :, None, :]                               # (TB, Npad, 1, TC)

        # Tie-break index grids (hoisted out of the chunk loop): target index i
        # on the major axis, local key index on the sublane axis, lanes broadcast.
        i_idx = lax.broadcasted_iota(jnp.int32, (1, npad, nk, 1), 1)
        k_loc = lax.broadcasted_iota(jnp.int32, (1, npad, nk, 1), 2)

        def accumulate(rank, xk, k0):
            # xk: (TB, nk, TC) key chunk starting at global set index k0.
            xk4 = xk[:, None, :, :]                             # (TB, 1, nk, TC)
            tie = (k_loc + k0) < i_idx                          # (1, Npad, nk, 1)
            less = (xk4 < xi) | ((xk4 == xi) & tie)             # (TB, Npad, nk, TC)
            # Sublane (key-axis) reduce: C stays on lanes, no relayout of the carry.
            return rank + jnp.sum(less.astype(jnp.float32), axis=2)

        rank0 = jnp.zeros((tb, npad, tc), jnp.float32)
        if unroll_chunks:
            # Few chunks: static unroll gives the scheduler cross-chunk visibility.
            rank = rank0
            for kc in range(num_chunks):
                k0 = kc * nk
                rank = accumulate(rank, x_cmp[:, k0:k0 + nk, :], k0)
        else:
            def body(kc, rank):
                k0 = pl.multiple_of(kc * nk, nk)
                return accumulate(rank, x_ref[:, pl.ds(k0, nk), :], k0)
            rank = lax.fori_loop(0, num_chunks, body, rank0)

        # Piecewise-linear weight at P * rank / (N - 1), hat-basis form:
        # coeff_q = max(0, 1 - |pos - q|)  (identical to the floor/frac gather).
        scale = float(p) / float(max(n_real - 1, 1))
        pos = rank * scale                                      # (TB, Npad, TC)
        w = w_ref[...].astype(jnp.float32)                      # (P+1, TC)
        w_elem = jnp.zeros((tb, npad, tc), jnp.float32)
        for q in range(p + 1):                                  # P+1 (~6) knots
            coeff = jnp.maximum(1.0 - jnp.abs(pos - float(q)), 0.0)
            w_elem = w_elem + coeff * w[q:q + 1, :][None, :, :]

        x_f32 = x_cmp.astype(jnp.float32)
        if npad != n_real:
            # Zero the +inf padded rows so they do not contribute to the sum.
            row = lax.broadcasted_iota(jnp.int32, (npad, 1), 0)[None, :, :]
            x_f32 = jnp.where(row < n_real, x_f32, 0.0)

        pooled = jnp.sum(x_f32 * w_elem, axis=1)                # (TB, TC)
        o_ref[...] = pooled[:, None, :].astype(o_ref.dtype)     # lane-dense store

    return kernel


def fspooling_forward(x_nodes, batch_size, weight, num_pieces, *,
                      batch_tile=None, channel_tile=None, k_chunk=None):
    """x_nodes: (B*N, C) node features for equal-size sets. Returns pooled (B, C)."""
    total, c = x_nodes.shape
    assert total % batch_size == 0, "dense/global path assumes equal-size sets"
    n = total // batch_size
    assert weight.shape == (c, num_pieces + 1)

    # Generation-aware VMEM sizing (v7x: 64 MiB per core; v5e/v6e: 128 MiB).
    vmem_cap = _vmem_capacity_bytes()
    budget = (vmem_cap * 3) // 8
    vmem_limit = int(min((vmem_cap * 3) // 4, 100 * 1024 * 1024))

    itemsize = jnp.dtype(x_nodes.dtype).itemsize
    tb, tc, nk, n_pad = _pick_tiles(batch_size, n, c, itemsize, budget)
    if channel_tile is not None:
        tc = channel_tile
    if k_chunk is not None:
        nk = k_chunk
        n_pad = _round_up(n, nk)
    if batch_tile is not None:
        tb = batch_tile
    assert c % tc == 0 and (tc == c or tc % 128 == 0), \
        "channel tile must be C itself or a multiple-of-128 divisor of C"
    assert nk % 8 == 0, "k_chunk must be a multiple of 8 (sublane-aligned keys)"
    assert n_pad % nk == 0
    assert batch_size % tb == 0, "batch_tile must divide the batch size"

    # Native (B, N, C) layout (no HBM transpose); +inf pads never rank below real
    # elements and are masked out of the final reduce inside the kernel.
    dense = x_nodes.reshape(batch_size, n, c)
    if n_pad != n:
        dense = jnp.pad(dense, ((0, 0), (0, n_pad - n), (0, 0)),
                        constant_values=float("inf"))

    # (P+1, C): each knot row is lane-dense along channels.
    w_knots = jnp.transpose(weight).astype(jnp.float32)

    num_chunks = n_pad // nk
    kernel = _make_fspool_kernel(nk=nk, n_real=n, unroll_chunks=num_chunks <= 8)

    out = pl.pallas_call(
        kernel,
        out_shape=jax.ShapeDtypeStruct((batch_size, 1, c), jnp.float32),
        grid_spec=pltpu.PrefetchScalarGridSpec(
            num_scalar_prefetch=0,
            grid=(batch_size // tb, c // tc),
            in_specs=[
                pl.BlockSpec((tb, n_pad, tc), lambda b, ci: (b, 0, ci)),
                pl.BlockSpec((num_pieces + 1, tc), lambda b, ci: (0, ci)),
            ],
            out_specs=pl.BlockSpec((tb, 1, tc), lambda b, ci: (b, 0, ci)),
        ),
        compiler_params=pltpu.CompilerParams(
            dimension_semantics=("parallel", "parallel"),   # megacore-shardable
            vmem_limit_bytes=vmem_limit,
        ),
    )(dense, w_knots)
    return out[:, 0, :]                                         # (B, C)


def fspooling_reference(x_nodes, batch_size, weight, num_pieces):
    """Pure-JAX reference mirroring the PyTorch forward (sort + weighted sum)."""
    total, c = x_nodes.shape
    n = total // batch_size
    dense = x_nodes.reshape(batch_size, n, c).astype(jnp.float32)       # (B, N, C)
    denom = float(max(n - 1, 1))
    sizes = jnp.minimum(jnp.arange(n, dtype=jnp.float32) / denom, 1.0)
    index = num_pieces * sizes
    idx = jnp.floor(index).astype(jnp.int32)
    frac = index - idx.astype(jnp.float32)
    idx_r = jnp.minimum(idx + 1, num_pieces)
    wgt = weight.astype(jnp.float32)
    w = (1.0 - frac)[None, :] * wgt[:, idx] + frac[None, :] * wgt[:, idx_r]  # (C, N)
    xs = jnp.sort(dense, axis=1)                                        # ascending
    return jnp.sum(xs * jnp.transpose(w)[None, :, :], axis=1)           # (B, C)


if __name__ == "__main__":
    root = jax.random.PRNGKey(0)

    # (B, N, C, P, kwargs): cover single-chunk, +inf-padded set axis (with ties),
    # and the lax.fori_loop multi-chunk path.
    cases = [
        (2, 16, 4, 5, {}),                 # one chunk, grid of 2 steps
        (3, 20, 4, 5, {}),                 # N padded 20 -> 24 with +inf keys
        (2, 80, 8, 5, {"k_chunk": 8}),     # 10 chunks -> lax.fori_loop path
    ]
    for i, (B, N, C, P, kwargs) in enumerate(cases):
        kx, kw = jax.random.split(jax.random.fold_in(root, i))
        x_nodes = jax.random.normal(kx, (B * N, C), dtype=jnp.float32)
        if i == 1:
            # Quantize to force repeated values: exercises the tie-break path.
            x_nodes = jnp.round(x_nodes)
        # FSortGraph parameter shape: (in_channels, n_pieces + 1); synthetic init.
        weight = jax.random.normal(kw, (C, P + 1), dtype=jnp.float32)

        out = jax.block_until_ready(
            fspooling_forward(x_nodes, B, weight, P, **kwargs))
        ref = fspooling_reference(x_nodes, B, weight, P)
        assert out.shape == (B, C)
        assert jnp.allclose(out, ref, atol=1e-4, rtol=1e-4), (i, out, ref)

    print("KERNEL_OK")
</pallas_src>

<mosaic_0001>
module attributes {stable_mosaic.version = 11 : i64} {
  func.func @kernel(%arg0: i32, %arg1: i32, %arg2: memref<1x16x4xf32, #tpu.memory_space<vmem>>, %arg3: memref<6x4xf32, #tpu.memory_space<vmem>>, %arg4: memref<1x1x4xf32, #tpu.memory_space<vmem>>) attributes {dimension_semantics = [#tpu.dimension_semantics<parallel>, #tpu.dimension_semantics<parallel>], iteration_bounds = array<i64: 2, 1>, scalar_prefetch = 0 : i64, scratch_operands = 0 : i64, tpu.core_type = #tpu.core_type<tc>, window_params = [{transform_indices = @transform_0, window_bounds = array<i64: 1, 16, 4>}, {transform_indices = @transform_1, window_bounds = array<i64: 6, 4>}, {transform_indices = @transform_2, window_bounds = array<i64: 1, 1, 4>}]} {
    %c0 = arith.constant 0 : index
    %c0_0 = arith.constant 0 : index
    %c0_1 = arith.constant 0 : index
    %0 = vector.load %arg2[%c0, %c0_0, %c0_1] : memref<1x16x4xf32, #tpu.memory_space<vmem>>, vector<1x16x4xf32>
    %1 = vector.shape_cast %0 : vector<1x16x4xf32> to vector<1x16x1x4xf32>
    %2 = tpu.iota {dimensions = array<i32: 1>} : vector<1x16x16x1xi32>
    %3 = tpu.iota {dimensions = array<i32: 2>} : vector<1x16x16x1xi32>
    %cst = arith.constant 0.000000e+00 : f32
    %4 = vector.broadcast %cst : f32 to vector<1x16x4xf32>
    %5 = vector.shape_cast %0 : vector<1x16x4xf32> to vector<1x1x16x4xf32>
    %c0_i32 = arith.constant 0 : i32
    %6 = vector.broadcast %c0_i32 : i32 to vector<1x16x16x1xi32>
    %7 = arith.addi %3, %6 : vector<1x16x16x1xi32>
    %8 = arith.cmpi slt, %7, %2 : vector<1x16x16x1xi32>
    %9 = vector.broadcast %5 : vector<1x1x16x4xf32> to vector<1x16x16x4xf32>
    %10 = vector.broadcast %1 : vector<1x16x1x4xf32> to vector<1x16x16x4xf32>
    %11 = arith.cmpf olt, %9, %10 : vector<1x16x16x4xf32>
    %12 = vector.broadcast %5 : vector<1x1x16x4xf32> to vector<1x16x16x4xf32>
    %13 = vector.broadcast %1 : vector<1x16x1x4xf32> to vector<1x16x16x4xf32>
    %14 = arith.cmpf oeq, %12, %13 : vector<1x16x16x4xf32>
    %15 = vector.broadcast %8 : vector<1x16x16x1xi1> to vector<1x16x16x4xi1>
    %16 = arith.andi %14, %15 : vector<1x16x16x4xi1>
    %17 = arith.ori %11, %16 : vector<1x16x16x4xi1>
    %18 = arith.extui %17 : vector<1x16x16x4xi1> to vector<1x16x16x4xi32>
    %19 = arith.sitofp %18 : vector<1x16x16x4xi32> to vector<1x16x16x4xf32>
    %cst_2 = arith.constant dense<0.000000e+00> : vector<1x16x4xf32>
    %20 = vector.multi_reduction <add>, %19, %cst_2 [2] : vector<1x16x16x4xf32> to vector<1x16x4xf32>
    %21 = arith.addf %4, %20 : vector<1x16x4xf32>
    %cst_3 = arith.constant 0.333333343 : f32
    %22 = vector.broadcast %cst_3 : f32 to vector<1x16x4xf32>
    %23 = arith.mulf %21, %22 : vector<1x16x4xf32>
    %c0_4 = arith.constant 0 : index
    %c0_5 = arith.constant 0 : index
    %24 = vector.load %arg3[%c0_4, %c0_5] : memref<6x4xf32, #tpu.memory_space<vmem>>, vector<6x4xf32>
    %cst_6 = arith.constant 0.000000e+00 : f32
    %25 = vector.broadcast %cst_6 : f32 to vector<1x16x4xf32>
    %cst_7 = arith.constant 0.000000e+00 : f32
    %26 = vector.broadcast %cst_7 : f32 to vector<1x16x4xf32>
    %27 = arith.subf %23, %26 : vector<1x16x4xf32>
    %28 = math.absf %27 : vector<1x16x4xf32>
    %cst_8 = arith.constant 1.000000e+00 : f32
    %29 = vector.broadcast %cst_8 : f32 to vector<1x16x4xf32>
    %30 = arith.subf %29, %28 : vector<1x16x4xf32>
    %cst_9 = arith.constant 0.000000e+00 : f32
    %31 = vector.broadcast %cst_9 : f32 to vector<1x16x4xf32>
    %32 = arith.maximumf %30, %31 : vector<1x16x4xf32>
    %33 = vector.extract_strided_slice %24 {offsets = [0, 0], sizes = [1, 4], strides = [1, 1]} : vector<6x4xf32> to vector<1x4xf32>
    %34 = vector.shape_cast %33 : vector<1x4xf32> to vector<1x1x4xf32>
    %35 = vector.broadcast %34 : vector<1x1x4xf32> to vector<1x16x4xf32>
    %36 = arith.mulf %32, %35 : vector<1x16x4xf32>
    %37 = arith.addf %25, %36 : vector<1x16x4xf32>
    %cst_10 = arith.constant 1.000000e+00 : f32
    %38 = vector.broadcast %cst_10 : f32 to vector<1x16x4xf32>
    %39 = arith.subf %23, %38 : vector<1x16x4xf32>
    %40 = math.absf %39 : vector<1x16x4xf32>
    %cst_11 = arith.constant 1.000000e+00 : f32
    %41 = vector.broadcast %cst_11 : f32 to vector<1x16x4xf32>
    %42 = arith.subf %41, %40 : vector<1x16x4xf32>
    %cst_12 = arith.constant 0.000000e+00 : f32
    %43 = vector.broadcast %cst_12 : f32 to vector<1x16x4xf32>
    %44 = arith.maximumf %42, %43 : vector<1x16x4xf32>
    %45 = vector.extract_strided_slice %24 {offsets = [1, 0], sizes = [1, 4], strides = [1, 1]} : vector<6x4xf32> to vector<1x4xf32>
    %46 = vector.shape_cast %45 : vector<1x4xf32> to vector<1x1x4xf32>
    %47 = vector.broadcast %46 : vector<1x1x4xf32> to vector<1x16x4xf32>
    %48 = arith.mulf %44, %47 : vector<1x16x4xf32>
    %49 = arith.addf %37, %48 : vector<1x16x4xf32>
    %cst_13 = arith.constant 2.000000e+00 : f32
    %50 = vector.broadcast %cst_13 : f32 to vector<1x16x4xf32>
    %51 = arith.subf %23, %50 : vector<1x16x4xf32>
    %52 = math.absf %51 : vector<1x16x4xf32>
    %cst_14 = arith.constant 1.000000e+00 : f32
    %53 = vector.broadcast %cst_14 : f32 to vector<1x16x4xf32>
    %54 = arith.subf %53, %52 : vector<1x16x4xf32>
    %cst_15 = arith.constant 0.000000e+00 : f32
    %55 = vector.broadcast %cst_15 : f32 to vector<1x16x4xf32>
    %56 = arith.maximumf %54, %55 : vector<1x16x4xf32>
    %57 = vector.extract_strided_slice %24 {offsets = [2, 0], sizes = [1, 4], strides = [1, 1]} : vector<6x4xf32> to vector<1x4xf32>
    %58 = vector.shape_cast %57 : vector<1x4xf32> to vector<1x1x4xf32>
    %59 = vector.broadcast %58 : vector<1x1x4xf32> to vector<1x16x4xf32>
    %60 = arith.mulf %56, %59 : vector<1x16x4xf32>
    %61 = arith.addf %49, %60 : vector<1x16x4xf32>
    %cst_16 = arith.constant 3.000000e+00 : f32
    %62 = vector.broadcast %cst_16 : f32 to vector<1x16x4xf32>
    %63 = arith.subf %23, %62 : vector<1x16x4xf32>
    %64 = math.absf %63 : vector<1x16x4xf32>
    %cst_17 = arith.constant 1.000000e+00 : f32
    %65 = vector.broadcast %cst_17 : f32 to vector<1x16x4xf32>
    %66 = arith.subf %65, %64 : vector<1x16x4xf32>
    %cst_18 = arith.constant 0.000000e+00 : f32
    %67 = vector.broadcast %cst_18 : f32 to vector<1x16x4xf32>
    %68 = arith.maximumf %66, %67 : vector<1x16x4xf32>
    %69 = vector.extract_strided_slice %24 {offsets = [3, 0], sizes = [1, 4], strides = [1, 1]} : vector<6x4xf32> to vector<1x4xf32>
    %70 = vector.shape_cast %69 : vector<1x4xf32> to vector<1x1x4xf32>
    %71 = vector.broadcast %70 : vector<1x1x4xf32> to vector<1x16x4xf32>
    %72 = arith.mulf %68, %71 : vector<1x16x4xf32>
    %73 = arith.addf %61, %72 : vector<1x16x4xf32>
    %cst_19 = arith.constant 4.000000e+00 : f32
    %74 = vector.broadcast %cst_19 : f32 to vector<1x16x4xf32>
    %75 = arith.subf %23, %74 : vector<1x16x4xf32>
    %76 = math.absf %75 : vector<1x16x4xf32>
    %cst_20 = arith.constant 1.000000e+00 : f32
    %77 = vector.broadcast %cst_20 : f32 to vector<1x16x4xf32>
    %78 = arith.subf %77, %76 : vector<1x16x4xf32>
    %cst_21 = arith.constant 0.000000e+00 : f32
    %79 = vector.broadcast %cst_21 : f32 to vector<1x16x4xf32>
    %80 = arith.maximumf %78, %79 : vector<1x16x4xf32>
    %81 = vector.extract_strided_slice %24 {offsets = [4, 0], sizes = [1, 4], strides = [1, 1]} : vector<6x4xf32> to vector<1x4xf32>
    %82 = vector.shape_cast %81 : vector<1x4xf32> to vector<1x1x4xf32>
    %83 = vector.broadcast %82 : vector<1x1x4xf32> to vector<1x16x4xf32>
    %84 = arith.mulf %80, %83 : vector<1x16x4xf32>
    %85 = arith.addf %73, %84 : vector<1x16x4xf32>
    %cst_22 = arith.constant 5.000000e+00 : f32
    %86 = vector.broadcast %cst_22 : f32 to vector<1x16x4xf32>
    %87 = arith.subf %23, %86 : vector<1x16x4xf32>
    %88 = math.absf %87 : vector<1x16x4xf32>
    %cst_23 = arith.constant 1.000000e+00 : f32
    %89 = vector.broadcast %cst_23 : f32 to vector<1x16x4xf32>
    %90 = arith.subf %89, %88 : vector<1x16x4xf32>
    %cst_24 = arith.constant 0.000000e+00 : f32
    %91 = vector.broadcast %cst_24 : f32 to vector<1x16x4xf32>
    %92 = arith.maximumf %90, %91 : vector<1x16x4xf32>
    %93 = vector.extract_strided_slice %24 {offsets = [5, 0], sizes = [1, 4], strides = [1, 1]} : vector<6x4xf32> to vector<1x4xf32>
    %94 = vector.shape_cast %93 : vector<1x4xf32> to vector<1x1x4xf32>
    %95 = vector.broadcast %94 : vector<1x1x4xf32> to vector<1x16x4xf32>
    %96 = arith.mulf %92, %95 : vector<1x16x4xf32>
    %97 = arith.addf %85, %96 : vector<1x16x4xf32>
    %98 = arith.mulf %0, %97 : vector<1x16x4xf32>
    %cst_25 = arith.constant dense<0.000000e+00> : vector<1x4xf32>
    %99 = vector.multi_reduction <add>, %98, %cst_25 [1] : vector<1x16x4xf32> to vector<1x4xf32>
    %100 = vector.shape_cast %99 : vector<1x4xf32> to vector<1x1x4xf32>
    %c0_26 = arith.constant 0 : index
    %c0_27 = arith.constant 0 : index
    %c0_28 = arith.constant 0 : index
    %101 = vector.load %arg4[%c0_26, %c0_27, %c0_28] : memref<1x1x4xf32, #tpu.memory_space<vmem>>, vector<1x1x4xf32>
    tpu.vector_store %arg4[%c0_26, %c0_27, %c0_28], %100 {strides = array<i32>} : memref<1x1x4xf32, #tpu.memory_space<vmem>>, vector<1x1x4xf32>,
    return
  }
  func.func @transform_0(%arg0: i32, %arg1: i32) -> (i32, i32, i32) {
    %c0_i32 = arith.constant 0 : i32
    %c0_i32_0 = arith.constant 0 : i32
    return %arg0, %c0_i32, %arg1 : i32, i32, i32
  }
  func.func @transform_1(%arg0: i32, %arg1: i32) -> (i32, i32) {
    %c0_i32 = arith.constant 0 : i32
    %c0_i32_0 = arith.constant 0 : i32
    return %c0_i32, %arg1 : i32, i32
  }
  func.func @transform_2(%arg0: i32, %arg1: i32) -> (i32, i32, i32) {
    %c0_i32 = arith.constant 0 : i32
    %c0_i32_0 = arith.constant 0 : i32
    return %arg0, %c0_i32, %arg1 : i32, i32, i32
  }
}

</mosaic_0001>

<llo_original>
// kernel: tpu_custom_call.1
$region0: #{tpu_custom_call.1}
  #allocation0 [shape = 'u32[]', space=smem, size = 0x4, offset = 0x4, fixed_abs, tag = 'smem constant byte address 0x4 - core index']
  #allocation1 [shape = 'u32[72,128]{1,0:T(1,128)}', space=vmem, size = 0x9000, scoped, tag = 'internal scratch']
  %s0 = inlined_call_operand.vmem [shape: f32[2,16,4], index: 0, kind: input, shape index: {}]
  %s1 = inlined_call_operand.vmem [shape: f32[6,4], index: 1, kind: input, shape index: {}]
  %s2 = inlined_call_operand.hbm [shape: f32[2,1,4], index: 2, kind: output, shape index: {}]
  %s3 = sld [smem:[#allocation0]]
  $region41: #{tpu_custom_call.1} parent=0
    _
  %s5 = ssub.s32 1, %s3
  %s6 = scalar_select 0, %s5, %s3
  $region1: #{tpu_custom_call.1} parent=0
    #allocation2 [shape = 'u8[1024]{0}', space=vmem, size = 0x400, scoped, tag = 'output window, operand 0']
    #allocation3 [shape = 's32[2]{0}', space=sflag, size = 0x8, scoped, tag = 'scoped memory for tpu_custom_call.1']
    %7 = vsyncpa [#allocation3], 0
    %s8 = scalar_lea.sflag [#allocation3], 1
    %9 = vsyncpa %s8, 0
    loop: start=0, step=1, limit=4
    $region2: #{tpu_custom_call.1} parent=1 // loop_pre_header
      _
    $region3: #{tpu_custom_call.1} parent=1 // loop_header
      %s11 = sphi 0, %s15
      %p12 = scmp.ge.s32.totalorder %s11, 4
      %s18 = sphi 0, %s30
      %s19 = sphi 0, %s26
      %s20 = sphi 0, %s18
      %s21 = sphi 0, %s19
      %s22 = sphi 0, %s20
      %s23 = sphi 0, %s21
      %s35 = sphi 0, %s37
      %s38 = sphi 0, %s35
      %s39 = sphi 0, %s38
      %s55 = sphi 0, %s39
      %s61 = sphi 0, %s63
      %s64 = sphi 0, %s61
      %s65 = sphi 0, %s64
      %s81 = sphi 0, %s65
      %s89 = sphi 0, %s91
      %s92 = sphi 0, %s89
      %s93 = sphi 0, %s92
      %s109 = sphi 0, %s93
    $region4: #{tpu_custom_call.1} parent=1 // loop_header_branch
      %14 = sbr.rel (%p12) target = $region8
    $region5: #{tpu_custom_call.1} parent=1 // loop_body
      %s16 = ssub.s32 %s11, 1
      %s17 = ssub.s32 %s11, 2
      %s24 = sadd.s32 1, %s19
      %p25 = scmp.ge.s32.totalorder %s24, 1
      %s26 = scalar_select %p25, 0, %s24
      %s27 = sadd.s32 1, %s18
      %s28 = scalar_select %p25, %s27, %s18
      %p29 = scmp.ge.s32.totalorder %s28, 2
      %s30 = scalar_select %p29, 0, %s28
      %s31 = ssub.s32 %s18, %s30
      %s32 = ssub.s32 %s19, %s26
      %s33 = sor.u32 %s31, %s32
      %p34 = scmp.eq.s32.totalorder %s33, 0
      %s36 = sadd.s32 %s35, 1
      %s37 = scalar_select %p34, %s35, %s36
      %p40 = pneg %p34
      %p41 = scmp.eq.s32.totalorder %s11, 1
      %p42 = por %p40, %p41
      %p43 = scmp.ne.s32.totalorder %s35, %s38
      %p44 = scmp.eq.s32.totalorder %s11, 0
      %p45 = por %p43, %p44
      %p46 = scmp.ne.s32.totalorder %s35, %s38
      %p47 = scmp.eq.s32.totalorder %s16, 1
      %p48 = por %p46, %p47
      %p49 = scmp.ne.s32.totalorder %s38, %s39
      %p50 = scmp.eq.s32.totalorder %s16, 0
      %p51 = por %p49, %p50
      %p52 = scmp.ne.s32.totalorder %s38, %s39
      %p53 = scmp.eq.s32.totalorder %s17, 1
      %p54 = por %p52, %p53
      %p56 = scmp.ne.s32.totalorder %s39, %s55
      %p57 = scmp.eq.s32.totalorder %s17, 0
      %p58 = por %p56, %p57
      %s59 = ssub.s32 %s19, %s26
      %p60 = scmp.eq.s32.totalorder %s59, 0
      %s62 = sadd.s32 %s61, 1
      %s63 = scalar_select %p60, %s61, %s62
      %p66 = pneg %p60
      %p67 = scmp.eq.s32.totalorder %s11, 1
      %p68 = por %p66, %p67
      %p69 = scmp.ne.s32.totalorder %s61, %s64
      %p70 = scmp.eq.s32.totalorder %s11, 0
      %p71 = por %p69, %p70
      %p72 = scmp.ne.s32.totalorder %s61, %s64
      %p73 = scmp.eq.s32.totalorder %s16, 1
      %p74 = por %p72, %p73
      %p75 = scmp.ne.s32.totalorder %s64, %s65
      %p76 = scmp.eq.s32.totalorder %s16, 0
      %p77 = por %p75, %p76
      %p78 = scmp.ne.s32.totalorder %s64, %s65
      %p79 = scmp.eq.s32.totalorder %s17, 1
      %p80 = por %p78, %p79
      %p82 = scmp.ne.s32.totalorder %s65, %s81
      %p83 = scmp.eq.s32.totalorder %s17, 0
      %p84 = por %p82, %p83
      %s85 = ssub.s32 %s18, %s30
      %s86 = ssub.s32 %s19, %s26
      %s87 = sor.u32 %s85, %s86
      %p88 = scmp.eq.s32.totalorder %s87, 0
      %s90 = sadd.s32 %s89, 1
      %s91 = scalar_select %p88, %s89, %s90
      %p94 = pneg %p88
      %p95 = scmp.eq.s32.totalorder %s11, 1
      %p96 = por %p94, %p95
      %p97 = scmp.ne.s32.totalorder %s89, %s92
      %p98 = scmp.eq.s32.totalorder %s11, 0
      %p99 = por %p97, %p98
      %p100 = scmp.ne.s32.totalorder %s89, %s92
      %p101 = scmp.eq.s32.totalorder %s16, 1
      %p102 = por %p100, %p101
      %p103 = scmp.ne.s32.totalorder %s92, %s93
      %p104 = scmp.eq.s32.totalorder %s16, 0
      %p105 = por %p103, %p104
      %p106 = scmp.ne.s32.totalorder %s92, %s93
      %p107 = scmp.eq.s32.totalorder %s17, 1
      %p108 = por %p106, %p107
      %p110 = scmp.ne.s32.totalorder %s93, %s109
      %p111 = scmp.eq.s32.totalorder %s17, 0
      %p112 = por %p110, %p111
      %p113 = scmp.le.s32.totalorder 1, %s11
      %p114 = scmp.lt.s32.totalorder %s11, 3
      %p115 = pnand %p113, %p114
      %p116 = pneg %p115
      // Predicated region
      $region9: #{tpu_custom_call.1} parent=5 // pred_check
        _
      $region10: #{tpu_custom_call.1} parent=5 // pred_check_branch
        %118 = sbr.rel (%p115) target = $region12
      $region11: #{tpu_custom_call.1} parent=5 // pred_region
        %s119 = ssub.s32 %s11, 1
        // Predicated region
        $region13: #{tpu_custom_call.1} parent=11 // pred_check
          %p120 = pneg %p77
        $region14: #{tpu_custom_call.1} parent=11 // pred_check_branch
          %122 = sbr.rel (%p120) target = $region16
        $region15: #{tpu_custom_call.1} parent=11 // pred_region
          %p123 = scmp.lt.s32.totalorder %s21, 0
          %s124 = scalar_select %p123, %s21, 0
          %s125 = smul.addr %s124, 8
          %s126 = scalar_lea.vmem %s1, %s125
        $region16: #{tpu_custom_call.1} parent=11 // pred_fallthru
          _
      $region12: #{tpu_custom_call.1} parent=5 // pred_fallthru
        _
      %p127 = scmp.lt.s32.totalorder %s11, 2
      // Predicated region
      $region17: #{tpu_custom_call.1} parent=5 // pred_check
        %p128 = pneg %p127
      $region18: #{tpu_custom_call.1} parent=5 // pred_check_branch
        %130 = sbr.rel (%p128) target = $region20
      $region19: #{tpu_custom_call.1} parent=5 // pred_region
        // Predicated region
        $region21: #{tpu_custom_call.1} parent=19 // pred_check
          %p131 = pneg %p45
        $region22: #{tpu_custom_call.1} parent=19 // pred_check_branch
          %133 = sbr.rel (%p131) target = $region24
        $region23: #{tpu_custom_call.1} parent=19 // pred_region
          %p134 = scmp.lt.s32.totalorder %s18, 1
          %s135 = scalar_select %p134, %s18, 1
          %p136 = scmp.lt.s32.totalorder %s19, 0
          %s137 = scalar_select %p136, %s19, 0
          %s138 = smul.addr %s135, 2
          %s139 = sadd.s32 %s137, %s138
          %s140 = smul.addr %s139, 8
          %s141 = scalar_lea.vmem %s0, %s140
        $region24: #{tpu_custom_call.1} parent=19 // pred_fallthru
          _
      $region20: #{tpu_custom_call.1} parent=5 // pred_fallthru
        _
      %p142 = scmp.le.s32.totalorder 1, %s11
      %p143 = scmp.lt.s32.totalorder %s11, 3
      %p144 = pnand %p142, %p143
      %p145 = pneg %p144
      // Predicated region
      $region25: #{tpu_custom_call.1} parent=5 // pred_check
        _
      $region26: #{tpu_custom_call.1} parent=5 // pred_check_branch
        %147 = sbr.rel (%p144) target = $region28
      $region27: #{tpu_custom_call.1} parent=5 // pred_region
        %s148 = ssub.s32 %s11, 1
        %p149 = scmp.lt.s32.totalorder %s20, 1
        %s150 = scalar_select %p149, %s20, 1
        %p151 = scmp.lt.s32.totalorder %s21, 0
        %s152 = scalar_select %p151, %s21, 0
        %s153 = smul.addr %s150, 2
        %s154 = sadd.s32 %s152, %s153
        %s155 = smul.addr %s154, 8
        %s156 = scalar_lea.vmem %s0, %s155
        %p157 = pneg %p51
        %p158 = pneg %p48
        %p159 = scmp.lt.s32.totalorder %s21, 0
        %s160 = scalar_select %p159, %s21, 0
        %s161 = smul.addr %s160, 8
        %s162 = scalar_lea.vmem %s1, %s161
        %p163 = pneg %p77
        %p164 = pneg %p74
        %p165 = pneg %p105
        %p166 = pneg %p102
        %s167 = sand.u32 %s92, 1
        %s168 = scalar_lea.sflag [#allocation3], %s167
        %s169 = sand.u32 %s92, 1
        %s170 = scalar_lea.vmem [#allocation2], %s169
        %p171 = scmp.lt.s32.totalorder %s20, 1
        %s172 = scalar_select %p171, %s20, 1
        %p173 = scmp.lt.s32.totalorder %s21, 0
        %s174 = scalar_select %p173, %s21, 0
        %s175 = smul.addr %s172, 2
        %s176 = sadd.s32 %s174, %s175
        %s177 = smul.addr %s176, 8
        %s178 = scalar_lea.vmem %s0, %s177
        %p179 = scmp.lt.s32.totalorder %s21, 0
        %s180 = scalar_select %p179, %s21, 0
        %s181 = smul.addr %s180, 8
        %s182 = scalar_lea.vmem %s1, %s181
        %v183 = vld [vmem:[%s178] sm:$0xff]
        %v184 = vld [vmem:[%s178 + $0x8] sm:$0xff]
        %v187 = vrot.slane %v183, 1
        %v188 = vrot.slane %v183, 2
        %v189 = vrot.slane %v183, 3
        %v190 = vrot.slane %v183, 4
        %v191 = vrot.slane %v183, 5
        %v192 = vrot.slane %v183, 6
        %v193 = vrot.slane %v183, 7
        %v194 = vrot.slane %v184, 1
        %v195 = vrot.slane %v184, 2
        %v196 = vrot.slane %v184, 3
        %v197 = vrot.slane %v184, 4
        %v198 = vrot.slane %v184, 5
        %v199 = vrot.slane %v184, 6
        %v200 = vrot.slane %v184, 7
        %v201 = vlaneseq
        %v202 = vshrl.u32 %v201, 7
        %v203 = vadd.s32 %v202, 8
        %vm204 = vcmp.lt.s32.totalorder %v202, 0
        %vm205 = vcmp.lt.s32.totalorder %v203, 0
        %vm206 = vcmp.lt.s32.totalorder %v202, 1
        %vm207 = vcmp.lt.s32.totalorder %v203, 1
        %vm208 = vcmp.lt.s32.totalorder %v202, 2
        %vm209 = vcmp.lt.s32.totalorder %v203, 2
        %vm210 = vcmp.lt.s32.totalorder %v202, 3
        %vm211 = vcmp.lt.s32.totalorder %v203, 3
        %vm212 = vcmp.lt.s32.totalorder %v202, 4
        %vm213 = vcmp.lt.s32.totalorder %v203, 4
        %vm214 = vcmp.lt.s32.totalorder %v202, 5
        %vm215 = vcmp.lt.s32.totalorder %v203, 5
        %vm216 = vcmp.lt.s32.totalorder %v202, 6
        %vm217 = vcmp.lt.s32.totalorder %v203, 6
        %vm218 = vcmp.lt.s32.totalorder %v202, 7
        %vm219 = vcmp.lt.s32.totalorder %v203, 7
        %vm220 = vcmp.lt.s32.totalorder %v202, 8
        %vm221 = vcmp.lt.s32.totalorder %v203, 8
        %vm222 = vcmp.lt.s32.totalorder %v202, 9
        %vm223 = vcmp.lt.s32.totalorder %v203, 9
        %vm224 = vcmp.lt.s32.totalorder %v202, 10
        %vm225 = vcmp.lt.s32.totalorder %v203, 10
        %vm226 = vcmp.lt.s32.totalorder %v202, 11
        %vm227 = vcmp.lt.s32.totalorder %v203, 11
        %vm228 = vcmp.lt.s32.totalorder %v202, 12
        %vm229 = vcmp.lt.s32.totalorder %v203, 12
        %vm230 = vcmp.lt.s32.totalorder %v202, 13
        %vm231 = vcmp.lt.s32.totalorder %v203, 13
        %vm232 = vcmp.lt.s32.totalorder %v202, 14
        %vm233 = vcmp.lt.s32.totalorder %v203, 14
        %vm234 = vcmp.lt.s32.totalorder %v202, 15
        %vm235 = vcmp.lt.s32.totalorder %v203, 15
        %v236 = vperm.slane %v183, 0
        %v237 = vperm.slane %v187, 0
        %v238 = vperm.slane %v188, 0
        %v239 = vperm.slane %v189, 0
        %v240 = vperm.slane %v190, 0
        %v241 = vperm.slane %v191, 0
        %v242 = vperm.slane %v192, 0
        %v243 = vperm.slane %v193, 0
        %v244 = vperm.slane %v184, 0
        %v245 = vperm.slane %v194, 0
        %v246 = vperm.slane %v195, 0
        %v247 = vperm.slane %v196, 0
        %v248 = vperm.slane %v197, 0
        %v249 = vperm.slane %v198, 0
        %v250 = vperm.slane %v199, 0
        %v251 = vperm.slane %v200, 0
        %vm268 = vcmp.lt.f32.partialorder %v183, %v236
        %vm269 = vcmp.lt.f32.partialorder %v184, %v236
        %vm270 = vcmp.lt.f32.partialorder %v183, %v237
        %vm271 = vcmp.lt.f32.partialorder %v184, %v237
        %vm272 = vcmp.lt.f32.partialorder %v183, %v238
        %vm273 = vcmp.lt.f32.partialorder %v184, %v238
        %vm274 = vcmp.lt.f32.partialorder %v183, %v239
        %vm275 = vcmp.lt.f32.partialorder %v184, %v239
        %vm276 = vcmp.lt.f32.partialorder %v183, %v240
        %vm277 = vcmp.lt.f32.partialorder %v184, %v240
        %vm278 = vcmp.lt.f32.partialorder %v183, %v241
        %vm279 = vcmp.lt.f32.partialorder %v184, %v241
        %vm280 = vcmp.lt.f32.partialorder %v183, %v242
        %vm281 = vcmp.lt.f32.partialorder %v184, %v242
        %vm282 = vcmp.lt.f32.partialorder %v183, %v243
        %vm283 = vcmp.lt.f32.partialorder %v184, %v243
        %vm284 = vcmp.lt.f32.partialorder %v183, %v244
        %vm285 = vcmp.lt.f32.partialorder %v184, %v244
        %vm286 = vcmp.lt.f32.partialorder %v183, %v245
        %vm287 = vcmp.lt.f32.partialorder %v184, %v245
        %vm288 = vcmp.lt.f32.partialorder %v183, %v246
        %vm289 = vcmp.lt.f32.partialorder %v184, %v246
        %vm290 = vcmp.lt.f32.partialorder %v183, %v247
        %vm291 = vcmp.lt.f32.partialorder %v184, %v247
        %vm292 = vcmp.lt.f32.partialorder %v183, %v248
        %vm293 = vcmp.lt.f32.partialorder %v184, %v248
        %vm294 = vcmp.lt.f32.partialorder %v183, %v249
        %vm295 = vcmp.lt.f32.partialorder %v184, %v249
        %vm296 = vcmp.lt.f32.partialorder %v183, %v250
        %vm297 = vcmp.lt.f32.partialorder %v184, %v250
        %vm298 = vcmp.lt.f32.partialorder %v183, %v251
        %vm299 = vcmp.lt.f32.partialorder %v184, %v251
        %vm300 = vcmp.eq.f32.partialorder %v183, %v236
        %vm301 = vcmp.eq.f32.partialorder %v184, %v236
        %vm302 = vcmp.eq.f32.partialorder %v183, %v237
        %vm303 = vcmp.eq.f32.partialorder %v184, %v237
        %vm304 = vcmp.eq.f32.partialorder %v183, %v238
        %vm305 = vcmp.eq.f32.partialorder %v184, %v238
        %vm306 = vcmp.eq.f32.partialorder %v183, %v239
        %vm307 = vcmp.eq.f32.partialorder %v184, %v239
        %vm308 = vcmp.eq.f32.partialorder %v183, %v240
        %vm309 = vcmp.eq.f32.partialorder %v184, %v240
        %vm310 = vcmp.eq.f32.partialorder %v183, %v241
        %vm311 = vcmp.eq.f32.partialorder %v184, %v241
        %vm312 = vcmp.eq.f32.partialorder %v183, %v242
        %vm313 = vcmp.eq.f32.partialorder %v184, %v242
        %vm314 = vcmp.eq.f32.partialorder %v183, %v243
        %vm315 = vcmp.eq.f32.partialorder %v184, %v243
        %vm316 = vcmp.eq.f32.partialorder %v183, %v244
        %vm317 = vcmp.eq.f32.partialorder %v184, %v244
        %vm318 = vcmp.eq.f32.partialorder %v183, %v245
        %vm319 = vcmp.eq.f32.partialorder %v184, %v245
        %vm320 = vcmp.eq.f32.partialorder %v183, %v246
        %vm321 = vcmp.eq.f32.partialorder %v184, %v246
        %vm322 = vcmp.eq.f32.partialorder %v183, %v247
        %vm323 = vcmp.eq.f32.partialorder %v184, %v247
        %vm324 = vcmp.eq.f32.partialorder %v183, %v248
        %vm325 = vcmp.eq.f32.partialorder %v184, %v248
        %vm326 = vcmp.eq.f32.partialorder %v183, %v249
        %vm327 = vcmp.eq.f32.partialorder %v184, %v249
        %vm328 = vcmp.eq.f32.partialorder %v183, %v250
        %vm329 = vcmp.eq.f32.partialorder %v184, %v250
        %vm330 = vcmp.eq.f32.partialorder %v183, %v251
        %vm331 = vcmp.eq.f32.partialorder %v184, %v251
        %v332 = vsel %vm204, 1, 0
        %v333 = vsel %vm205, 1, 0
        %v334 = vsel %vm206, 1, 0
        %v335 = vsel %vm207, 1, 0
        %v336 = vsel %vm208, 1, 0
        %v337 = vsel %vm209, 1, 0
        %v338 = vsel %vm210, 1, 0
        %v339 = vsel %vm211, 1, 0
        %v340 = vsel %vm212, 1, 0
        %v341 = vsel %vm213, 1, 0
        %v342 = vsel %vm214, 1, 0
        %v343 = vsel %vm215, 1, 0
        %v344 = vsel %vm216, 1, 0
        %v345 = vsel %vm217, 1, 0
        %v346 = vsel %vm218, 1, 0
        %v347 = vsel %vm219, 1, 0
        %v348 = vsel %vm220, 1, 0
        %v349 = vsel %vm221, 1, 0
        %v350 = vsel %vm222, 1, 0
        %v351 = vsel %vm223, 1, 0
        %v352 = vsel %vm224, 1, 0
        %v353 = vsel %vm225, 1, 0
        %v354 = vsel %vm226, 1, 0
        %v355 = vsel %vm227, 1, 0
        %v356 = vsel %vm228, 1, 0
        %v357 = vsel %vm229, 1, 0
        %v358 = vsel %vm230, 1, 0
        %v359 = vsel %vm231, 1, 0
        %v360 = vsel %vm232, 1, 0
        %v361 = vsel %vm233, 1, 0
        %v362 = vsel %vm234, 1, 0
        %v363 = vsel %vm235, 1, 0
        %vm364 = vcmp.eq.s32.totalorder %v332, 1
        %vm365 = vcmp.eq.s32.totalorder %v333, 1
        %vm366 = vcmp.eq.s32.totalorder %v334, 1
        %vm367 = vcmp.eq.s32.totalorder %v335, 1
        %vm368 = vcmp.eq.s32.totalorder %v336, 1
        %vm369 = vcmp.eq.s32.totalorder %v337, 1
        %vm370 = vcmp.eq.s32.totalorder %v338, 1
        %vm371 = vcmp.eq.s32.totalorder %v339, 1
        %vm372 = vcmp.eq.s32.totalorder %v340, 1
        %vm373 = vcmp.eq.s32.totalorder %v341, 1
        %vm374 = vcmp.eq.s32.totalorder %v342, 1
        %vm375 = vcmp.eq.s32.totalorder %v343, 1
        %vm376 = vcmp.eq.s32.totalorder %v344, 1
        %vm377 = vcmp.eq.s32.totalorder %v345, 1
        %vm378 = vcmp.eq.s32.totalorder %v346, 1
        %vm379 = vcmp.eq.s32.totalorder %v347, 1
        %vm380 = vcmp.eq.s32.totalorder %v348, 1
        %vm381 = vcmp.eq.s32.totalorder %v349, 1
        %vm382 = vcmp.eq.s32.totalorder %v350, 1
        %vm383 = vcmp.eq.s32.totalorder %v351, 1
        %vm384 = vcmp.eq.s32.totalorder %v352, 1
        %vm385 = vcmp.eq.s32.totalorder %v353, 1
        %vm386 = vcmp.eq.s32.totalorder %v354, 1
        %vm387 = vcmp.eq.s32.totalorder %v355, 1
        %vm388 = vcmp.eq.s32.totalorder %v356, 1
        %vm389 = vcmp.eq.s32.totalorder %v357, 1
        %vm390 = vcmp.eq.s32.totalorder %v358, 1
        %vm391 = vcmp.eq.s32.totalorder %v359, 1
        %vm392 = vcmp.eq.s32.totalorder %v360, 1
        %vm393 = vcmp.eq.s32.totalorder %v361, 1
        %vm394 = vcmp.eq.s32.totalorder %v362, 1
        %vm395 = vcmp.eq.s32.totalorder %v363, 1
        %vm396 = vmand %vm300, %vm364
        %vm397 = vmand %vm301, %vm365
        %vm398 = vmand %vm302, %vm366
        %vm399 = vmand %vm303, %vm367
        %vm400 = vmand %vm304, %vm368
        %vm401 = vmand %vm305, %vm369
        %vm402 = vmand %vm306, %vm370
        %vm403 = vmand %vm307, %vm371
        %vm404 = vmand %vm308, %vm372
        %vm405 = vmand %vm309, %vm373
        %vm406 = vmand %vm310, %vm374
        %vm407 = vmand %vm311, %vm375
        %vm408 = vmand %vm312, %vm376
        %vm409 = vmand %vm313, %vm377
        %vm410 = vmand %vm314, %vm378
        %vm411 = vmand %vm315, %vm379
        %vm412 = vmand %vm316, %vm380
        %vm413 = vmand %vm317, %vm381
        %vm414 = vmand %vm318, %vm382
        %vm415 = vmand %vm319, %vm383
        %vm416 = vmand %vm320, %vm384
        %vm417 = vmand %vm321, %vm385
        %vm418 = vmand %vm322, %vm386
        %vm419 = vmand %vm323, %vm387
        %vm420 = vmand %vm324, %vm388
        %vm421 = vmand %vm325, %vm389
        %vm422 = vmand %vm326, %vm390
        %vm423 = vmand %vm327, %vm391
        %vm424 = vmand %vm328, %vm392
        %vm425 = vmand %vm329, %vm393
        %vm426 = vmand %vm330, %vm394
        %vm427 = vmand %vm331, %vm395
        %vm428 = vmor %vm268, %vm396
        %vm429 = vmor %vm269, %vm397
        %vm430 = vmor %vm270, %vm398
        %vm431 = vmor %vm271, %vm399
        %vm432 = vmor %vm272, %vm400
        %vm433 = vmor %vm273, %vm401
        %vm434 = vmor %vm274, %vm402
        %vm435 = vmor %vm275, %vm403
        %vm436 = vmor %vm276, %vm404
        %vm437 = vmor %vm277, %vm405
        %vm438 = vmor %vm278, %vm406
        %vm439 = vmor %vm279, %vm407
        %vm440 = vmor %vm280, %vm408
        %vm441 = vmor %vm281, %vm409
        %vm442 = vmor %vm282, %vm410
        %vm443 = vmor %vm283, %vm411
        %vm444 = vmor %vm284, %vm412
        %vm445 = vmor %vm285, %vm413
        %vm446 = vmor %vm286, %vm414
        %vm447 = vmor %vm287, %vm415
        %vm448 = vmor %vm288, %vm416
        %vm449 = vmor %vm289, %vm417
        %vm450 = vmor %vm290, %vm418
        %vm451 = vmor %vm291, %vm419
        %vm452 = vmor %vm292, %vm420
        %vm453 = vmor %vm293, %vm421
        %vm454 = vmor %vm294, %vm422
        %vm455 = vmor %vm295, %vm423
        %vm456 = vmor %vm296, %vm424
        %vm457 = vmor %vm297, %vm425
        %vm458 = vmor %vm298, %vm426
        %vm459 = vmor %vm299, %vm427
        %v460 = vsel %vm428, 1, 0
        %v461 = vsel %vm429, 1, 0
        %v462 = vsel %vm430, 1, 0
        %v463 = vsel %vm431, 1, 0
        %v464 = vsel %vm432, 1, 0
        %v465 = vsel %vm433, 1, 0
        %v466 = vsel %vm434, 1, 0
        %v467 = vsel %vm435, 1, 0
        %v468 = vsel %vm436, 1, 0
        %v469 = vsel %vm437, 1, 0
        %v470 = vsel %vm438, 1, 0
        %v471 = vsel %vm439, 1, 0
        %v472 = vsel %vm440, 1, 0
        %v473 = vsel %vm441, 1, 0
        %v474 = vsel %vm442, 1, 0
        %v475 = vsel %vm443, 1, 0
        %v476 = vsel %vm444, 1, 0
        %v477 = vsel %vm445, 1, 0
        %v478 = vsel %vm446, 1, 0
        %v479 = vsel %vm447, 1, 0
        %v480 = vsel %vm448, 1, 0
        %v481 = vsel %vm449, 1, 0
        %v482 = vsel %vm450, 1, 0
        %v483 = vsel %vm451, 1, 0
        %v484 = vsel %vm452, 1, 0
        %v485 = vsel %vm453, 1, 0
        %v486 = vsel %vm454, 1, 0
        %v487 = vsel %vm455, 1, 0
        %v488 = vsel %vm456, 1, 0
        %v489 = vsel %vm457, 1, 0
        %v490 = vsel %vm458, 1, 0
        %v491 = vsel %vm459, 1, 0
        %v492 = vcvt.s32.f32 %v460
        %v493 = vcvt.s32.f32 %v461
        %v494 = vcvt.s32.f32 %v462
        %v495 = vcvt.s32.f32 %v463
        %v496 = vcvt.s32.f32 %v464
        %v497 = vcvt.s32.f32 %v465
        %v498 = vcvt.s32.f32 %v466
        %v499 = vcvt.s32.f32 %v467
        %v500 = vcvt.s32.f32 %v468
        %v501 = vcvt.s32.f32 %v469
        %v502 = vcvt.s32.f32 %v470
        %v503 = vcvt.s32.f32 %v471
        %v504 = vcvt.s32.f32 %v472
        %v505 = vcvt.s32.f32 %v473
        %v506 = vcvt.s32.f32 %v474
        %v507 = vcvt.s32.f32 %v475
        %v508 = vcvt.s32.f32 %v476
        %v509 = vcvt.s32.f32 %v477
        %v510 = vcvt.s32.f32 %v478
        %v511 = vcvt.s32.f32 %v479
        %v512 = vcvt.s32.f32 %v480
        %v513 = vcvt.s32.f32 %v481
        %v514 = vcvt.s32.f32 %v482
        %v515 = vcvt.s32.f32 %v483
        %v516 = vcvt.s32.f32 %v484
        %v517 = vcvt.s32.f32 %v485
        %v518 = vcvt.s32.f32 %v486
        %v519 = vcvt.s32.f32 %v487
        %v520 = vcvt.s32.f32 %v488
        %v521 = vcvt.s32.f32 %v489
        %v522 = vcvt.s32.f32 %v490
        %v523 = vcvt.s32.f32 %v491
        %vm524 = vcmask 31744
        %v525 = vsel %vm524, %v492, 0.0
        %v526 = vsel %vm524, %v493, 0.0
        %v527 = vadd.f32 %v525, %v526
        %v528 = vrot.slane %v527, 4
        %v529 = vadd.f32 %v527, %v528
        %v530 = vrot.slane %v529, 2
        %v531 = vadd.f32 %v529, %v530
        %v532 = vrot.slane %v531, 1
        %v533 = vadd.f32 %v531, %v532
        %v534 = vsel %vm524, %v494, 0.0
        %v535 = vsel %vm524, %v495, 0.0
        %v536 = vadd.f32 %v534, %v535
        %v537 = vrot.slane %v536, 4
        %v538 = vadd.f32 %v536, %v537
        %v539 = vrot.slane %v538, 2
        %v540 = vadd.f32 %v538, %v539
        %v541 = vrot.slane %v540, 1
        %v542 = vadd.f32 %v540, %v541
        %v543 = vsel %vm524, %v496, 0.0
        %v544 = vsel %vm524, %v497, 0.0
        %v545 = vadd.f32 %v543, %v544
        %v546 = vrot.slane %v545, 4
        %v547 = vadd.f32 %v545, %v546
        %v548 = vrot.slane %v547, 2
        %v549 = vadd.f32 %v547, %v548
        %v550 = vrot.slane %v549, 1
        %v551 = vadd.f32 %v549, %v550
        %v552 = vsel %vm524, %v498, 0.0
        %v553 = vsel %vm524, %v499, 0.0
        %v554 = vadd.f32 %v552, %v553
        %v555 = vrot.slane %v554, 4
        %v556 = vadd.f32 %v554, %v555
        %v557 = vrot.slane %v556, 2
        %v558 = vadd.f32 %v556, %v557
        %v559 = vrot.slane %v558, 1
        %v560 = vadd.f32 %v558, %v559
        %v561 = vsel %vm524, %v500, 0.0
        %v562 = vsel %vm524, %v501, 0.0
        %v563 = vadd.f32 %v561, %v562
        %v564 = vrot.slane %v563, 4
        %v565 = vadd.f32 %v563, %v564
        %v566 = vrot.slane %v565, 2
        %v567 = vadd.f32 %v565, %v566
        %v568 = vrot.slane %v567, 1
        %v569 = vadd.f32 %v567, %v568
        %v570 = vsel %vm524, %v502, 0.0
        %v571 = vsel %vm524, %v503, 0.0
        %v572 = vadd.f32 %v570, %v571
        %v573 = vrot.slane %v572, 4
        %v574 = vadd.f32 %v572, %v573
        %v575 = vrot.slane %v574, 2
        %v576 = vadd.f32 %v574, %v575
        %v577 = vrot.slane %v576, 1
        %v578 = vadd.f32 %v576, %v577
        %v579 = vsel %vm524, %v504, 0.0
        %v580 = vsel %vm524, %v505, 0.0
        %v581 = vadd.f32 %v579, %v580
        %v582 = vrot.slane %v581, 4
        %v583 = vadd.f32 %v581, %v582
        %v584 = vrot.slane %v583, 2
        %v585 = vadd.f32 %v583, %v584
        %v586 = vrot.slane %v585, 1
        %v587 = vadd.f32 %v585, %v586
        %v588 = vsel %vm524, %v506, 0.0
        %v589 = vsel %vm524, %v507, 0.0
        %v590 = vadd.f32 %v588, %v589
        %v591 = vrot.slane %v590, 4
        %v592 = vadd.f32 %v590, %v591
        %v593 = vrot.slane %v592, 2
        %v594 = vadd.f32 %v592, %v593
        %v595 = vrot.slane %v594, 1
        %v596 = vadd.f32 %v594, %v595
        %v597 = vsel %vm524, %v508, 0.0
        %v598 = vsel %vm524, %v509, 0.0
        %v599 = vadd.f32 %v597, %v598
        %v600 = vrot.slane %v599, 4
        %v601 = vadd.f32 %v599, %v600
        %v602 = vrot.slane %v601, 2
        %v603 = vadd.f32 %v601, %v602
        %v604 = vrot.slane %v603, 1
        %v605 = vadd.f32 %v603, %v604
        %v606 = vsel %vm524, %v510, 0.0
        %v607 = vsel %vm524, %v511, 0.0
        %v608 = vadd.f32 %v606, %v607
        %v609 = vrot.slane %v608, 4
        %v610 = vadd.f32 %v608, %v609
        %v611 = vrot.slane %v610, 2
        %v612 = vadd.f32 %v610, %v611
        %v613 = vrot.slane %v612, 1
        %v614 = vadd.f32 %v612, %v613
        %v615 = vsel %vm524, %v512, 0.0
        %v616 = vsel %vm524, %v513, 0.0
        %v617 = vadd.f32 %v615, %v616
        %v618 = vrot.slane %v617, 4
        %v619 = vadd.f32 %v617, %v618
        %v620 = vrot.slane %v619, 2
        %v621 = vadd.f32 %v619, %v620
        %v622 = vrot.slane %v621, 1
        %v623 = vadd.f32 %v621, %v622
        %v624 = vsel %vm524, %v514, 0.0
        %v625 = vsel %vm524, %v515, 0.0
        %v626 = vadd.f32 %v624, %v625
        %v627 = vrot.slane %v626, 4
        %v628 = vadd.f32 %v626, %v627
        %v629 = vrot.slane %v628, 2
        %v630 = vadd.f32 %v628, %v629
        %v631 = vrot.slane %v630, 1
        %v632 = vadd.f32 %v630, %v631
        %v633 = vsel %vm524, %v516, 0.0
        %v634 = vsel %vm524, %v517, 0.0
        %v635 = vadd.f32 %v633, %v634
        %v636 = vrot.slane %v635, 4
        %v637 = vadd.f32 %v635, %v636
        %v638 = vrot.slane %v637, 2
        %v639 = vadd.f32 %v637, %v638
        %v640 = vrot.slane %v639, 1
        %v641 = vadd.f32 %v639, %v640
        %v642 = vsel %vm524, %v518, 0.0
        %v643 = vsel %vm524, %v519, 0.0
        %v644 = vadd.f32 %v642, %v643
        %v645 = vrot.slane %v644, 4
        %v646 = vadd.f32 %v644, %v645
        %v647 = vrot.slane %v646, 2
        %v648 = vadd.f32 %v646, %v647
        %v649 = vrot.slane %v648, 1
        %v650 = vadd.f32 %v648, %v649
        %v651 = vsel %vm524, %v520, 0.0
        %v652 = vsel %vm524, %v521, 0.0
        %v653 = vadd.f32 %v651, %v652
        %v654 = vrot.slane %v653, 4
        %v655 = vadd.f32 %v653, %v654
        %v656 = vrot.slane %v655, 2
        %v657 = vadd.f32 %v655, %v656
        %v658 = vrot.slane %v657, 1
        %v659 = vadd.f32 %v657, %v658
        %v660 = vsel %vm524, %v522, 0.0
        %v661 = vsel %vm524, %v523, 0.0
        %v662 = vadd.f32 %v660, %v661
        %v663 = vrot.slane %v662, 4
        %v664 = vadd.f32 %v662, %v663
        %v665 = vrot.slane %v664, 2
        %v666 = vadd.f32 %v664, %v665
        %v667 = vrot.slane %v666, 1
        %v668 = vadd.f32 %v666, %v667
        %v669 = vadd.f32 %v533, 0.0
        %v670 = vadd.f32 %v542, 0.0
        %v671 = vadd.f32 %v551, 0.0
        %v672 = vadd.f32 %v560, 0.0
        %v673 = vadd.f32 %v569, 0.0
        %v674 = vadd.f32 %v578, 0.0
        %v675 = vadd.f32 %v587, 0.0
        %v676 = vadd.f32 %v596, 0.0
        %v677 = vadd.f32 %v605, 0.0
        %v678 = vadd.f32 %v614, 0.0
        %v679 = vadd.f32 %v623, 0.0
        %v680 = vadd.f32 %v632, 0.0
        %v681 = vadd.f32 %v641, 0.0
        %v682 = vadd.f32 %v650, 0.0
        %v683 = vadd.f32 %v659, 0.0
        %v684 = vadd.f32 %v668, 0.0
        %v685 = vmul.f32 %v669, 0.33333334
        %v686 = vmul.f32 %v670, 0.33333334
        %v687 = vmul.f32 %v671, 0.33333334
        %v688 = vmul.f32 %v672, 0.33333334
        %v689 = vmul.f32 %v673, 0.33333334
        %v690 = vmul.f32 %v674, 0.33333334
        %v691 = vmul.f32 %v675, 0.33333334
        %v692 = vmul.f32 %v676, 0.33333334
        %v693 = vmul.f32 %v677, 0.33333334
        %v694 = vmul.f32 %v678, 0.33333334
        %v695 = vmul.f32 %v679, 0.33333334
        %v696 = vmul.f32 %v680, 0.33333334
        %v697 = vmul.f32 %v681, 0.33333334
        %v698 = vmul.f32 %v682, 0.33333334
        %v699 = vmul.f32 %v683, 0.33333334
        %v700 = vmul.f32 %v684, 0.33333334
        %v701 = vld [vmem:[%s182] sm:$0x3f]
        %v702 = vand.u32 2147483647, %v685
        %v703 = vand.u32 2147483647, %v686
        %v704 = vand.u32 2147483647, %v687
        %v705 = vand.u32 2147483647, %v688
        %v706 = vand.u32 2147483647, %v689
        %v707 = vand.u32 2147483647, %v690
        %v708 = vand.u32 2147483647, %v691
        %v709 = vand.u32 2147483647, %v692
        %v710 = vand.u32 2147483647, %v693
        %v711 = vand.u32 2147483647, %v694
        %v712 = vand.u32 2147483647, %v695
        %v713 = vand.u32 2147483647, %v696
        %v714 = vand.u32 2147483647, %v697
        %v715 = vand.u32 2147483647, %v698
        %v716 = vand.u32 2147483647, %v699
        %v717 = vand.u32 2147483647, %v700
        %v718 = vsub.f32 1.0, %v702
        %v719 = vsub.f32 1.0, %v703
        %v720 = vsub.f32 1.0, %v704
        %v721 = vsub.f32 1.0, %v705
        %v722 = vsub.f32 1.0, %v706
        %v723 = vsub.f32 1.0, %v707
        %v724 = vsub.f32 1.0, %v708
        %v725 = vsub.f32 1.0, %v709
        %v726 = vsub.f32 1.0, %v710
        %v727 = vsub.f32 1.0, %v711
        %v728 = vsub.f32 1.0, %v712
        %v729 = vsub.f32 1.0, %v713
        %v730 = vsub.f32 1.0, %v714
        %v731 = vsub.f32 1.0, %v715
        %v732 = vsub.f32 1.0, %v716
        %v733 = vsub.f32 1.0, %v717
        %v734 = vmax.f32 %v718, 0.0
        %v735 = vmax.f32 %v719, 0.0
        %v736 = vmax.f32 %v720, 0.0
        %v737 = vmax.f32 %v721, 0.0
        %v738 = vmax.f32 %v722, 0.0
        %v739 = vmax.f32 %v723, 0.0
        %v740 = vmax.f32 %v724, 0.0
        %v741 = vmax.f32 %v725, 0.0
        %v742 = vmax.f32 %v726, 0.0
        %v743 = vmax.f32 %v727, 0.0
        %v744 = vmax.f32 %v728, 0.0
        %v745 = vmax.f32 %v729, 0.0
        %v746 = vmax.f32 %v730, 0.0
        %v747 = vmax.f32 %v731, 0.0
        %v748 = vmax.f32 %v732, 0.0
        %v749 = vmax.f32 %v733, 0.0
        %v750 = vperm.slane %v701, 0
        %v751 = vmul.f32 %v734, %v750
        %v752 = vmul.f32 %v735, %v750
        %v753 = vmul.f32 %v736, %v750
        %v754 = vmul.f32 %v737, %v750
        %v755 = vmul.f32 %v738, %v750
        %v756 = vmul.f32 %v739, %v750
        %v757 = vmul.f32 %v740, %v750
        %v758 = vmul.f32 %v741, %v750
        %v759 = vmul.f32 %v742, %v750
        %v760 = vmul.f32 %v743, %v750
        %v761 = vmul.f32 %v744, %v750
        %v762 = vmul.f32 %v745, %v750
        %v763 = vmul.f32 %v746, %v750
        %v764 = vmul.f32 %v747, %v750
        %v765 = vmul.f32 %v748, %v750
        %v766 = vmul.f32 %v749, %v750
        %v767 = vadd.f32 %v751, 0.0
        %v768 = vadd.f32 %v752, 0.0
        %v769 = vadd.f32 %v753, 0.0
        %v770 = vadd.f32 %v754, 0.0
        %v771 = vadd.f32 %v755, 0.0
        %v772 = vadd.f32 %v756, 0.0
        %v773 = vadd.f32 %v757, 0.0
        %v774 = vadd.f32 %v758, 0.0
        %v775 = vadd.f32 %v759, 0.0
        %v776 = vadd.f32 %v760, 0.0
        %v777 = vadd.f32 %v761, 0.0
        %v778 = vadd.f32 %v762, 0.0
        %v779 = vadd.f32 %v763, 0.0
        %v780 = vadd.f32 %v764, 0.0
        %v781 = vadd.f32 %v765, 0.0
        %v782 = vadd.f32 %v766, 0.0
        %v783 = vsub.f32 %v685, 1.0
        %v784 = vsub.f32 %v686, 1.0
        %v785 = vsub.f32 %v687, 1.0
        %v786 = vsub.f32 %v688, 1.0
        %v787 = vsub.f32 %v689, 1.0
        %v788 = vsub.f32 %v690, 1.0
        %v789 = vsub.f32 %v691, 1.0
        %v790 = vsub.f32 %v692, 1.0
        %v791 = vsub.f32 %v693, 1.0
        %v792 = vsub.f32 %v694, 1.0
        %v793 = vsub.f32 %v695, 1.0
        %v794 = vsub.f32 %v696, 1.0
        %v795 = vsub.f32 %v697, 1.0
        %v796 = vsub.f32 %v698, 1.0
        %v797 = vsub.f32 %v699, 1.0
        %v798 = vsub.f32 %v700, 1.0
        %v799 = vand.u32 2147483647, %v783
        %v800 = vand.u32 2147483647, %v784
        %v801 = vand.u32 2147483647, %v785
        %v802 = vand.u32 2147483647, %v786
        %v803 = vand.u32 2147483647, %v787
        %v804 = vand.u32 2147483647, %v788
        %v805 = vand.u32 2147483647, %v789
        %v806 = vand.u32 2147483647, %v790
        %v807 = vand.u32 2147483647, %v791
        %v808 = vand.u32 2147483647, %v792
        %v809 = vand.u32 2147483647, %v793
        %v810 = vand.u32 2147483647, %v794
        %v811 = vand.u32 2147483647, %v795
        %v812 = vand.u32 2147483647, %v796
        %v813 = vand.u32 2147483647, %v797
        %v814 = vand.u32 2147483647, %v798
        %v815 = vsub.f32 1.0, %v799
        %v816 = vsub.f32 1.0, %v800
        %v817 = vsub.f32 1.0, %v801
        %v818 = vsub.f32 1.0, %v802
        %v819 = vsub.f32 1.0, %v803
        %v820 = vsub.f32 1.0, %v804
        %v821 = vsub.f32 1.0, %v805
        %v822 = vsub.f32 1.0, %v806
        %v823 = vsub.f32 1.0, %v807
        %v824 = vsub.f32 1.0, %v808
        %v825 = vsub.f32 1.0, %v809
        %v826 = vsub.f32 1.0, %v810
        %v827 = vsub.f32 1.0, %v811
        %v828 = vsub.f32 1.0, %v812
        %v829 = vsub.f32 1.0, %v813
        %v830 = vsub.f32 1.0, %v814
        %v831 = vmax.f32 %v815, 0.0
        %v832 = vmax.f32 %v816, 0.0
        %v833 = vmax.f32 %v817, 0.0
        %v834 = vmax.f32 %v818, 0.0
        %v835 = vmax.f32 %v819, 0.0
        %v836 = vmax.f32 %v820, 0.0
        %v837 = vmax.f32 %v821, 0.0
        %v838 = vmax.f32 %v822, 0.0
        %v839 = vmax.f32 %v823, 0.0
        %v840 = vmax.f32 %v824, 0.0
        %v841 = vmax.f32 %v825, 0.0
        %v842 = vmax.f32 %v826, 0.0
        %v843 = vmax.f32 %v827, 0.0
        %v844 = vmax.f32 %v828, 0.0
        %v845 = vmax.f32 %v829, 0.0
        %v846 = vmax.f32 %v830, 0.0
        %v847 = vperm.slane %v701, 1
        %v848 = vmul.f32 %v831, %v847
        %v849 = vmul.f32 %v832, %v847
        %v850 = vmul.f32 %v833, %v847
        %v851 = vmul.f32 %v834, %v847
        %v852 = vmul.f32 %v835, %v847
        %v853 = vmul.f32 %v836, %v847
        %v854 = vmul.f32 %v837, %v847
        %v855 = vmul.f32 %v838, %v847
        %v856 = vmul.f32 %v839, %v847
        %v857 = vmul.f32 %v840, %v847
        %v858 = vmul.f32 %v841, %v847
        %v859 = vmul.f32 %v842, %v847
        %v860 = vmul.f32 %v843, %v847
        %v861 = vmul.f32 %v844, %v847
        %v862 = vmul.f32 %v845, %v847
        %v863 = vmul.f32 %v846, %v847
        %v864 = vadd.f32 %v767, %v848
        %v865 = vadd.f32 %v768, %v849
        %v866 = vadd.f32 %v769, %v850
        %v867 = vadd.f32 %v770, %v851
        %v868 = vadd.f32 %v771, %v852
        %v869 = vadd.f32 %v772, %v853
        %v870 = vadd.f32 %v773, %v854
        %v871 = vadd.f32 %v774, %v855
        %v872 = vadd.f32 %v775, %v856
        %v873 = vadd.f32 %v776, %v857
        %v874 = vadd.f32 %v777, %v858
        %v875 = vadd.f32 %v778, %v859
        %v876 = vadd.f32 %v779, %v860
        %v877 = vadd.f32 %v780, %v861
        %v878 = vadd.f32 %v781, %v862
        %v879 = vadd.f32 %v782, %v863
        %v880 = vsub.f32 %v685, 2.0
        %v881 = vsub.f32 %v686, 2.0
        %v882 = vsub.f32 %v687, 2.0
        %v883 = vsub.f32 %v688, 2.0
        %v884 = vsub.f32 %v689, 2.0
        %v885 = vsub.f32 %v690, 2.0
        %v886 = vsub.f32 %v691, 2.0
        %v887 = vsub.f32 %v692, 2.0
        %v888 = vsub.f32 %v693, 2.0
        %v889 = vsub.f32 %v694, 2.0
        %v890 = vsub.f32 %v695, 2.0
        %v891 = vsub.f32 %v696, 2.0
        %v892 = vsub.f32 %v697, 2.0
        %v893 = vsub.f32 %v698, 2.0
        %v894 = vsub.f32 %v699, 2.0
        %v895 = vsub.f32 %v700, 2.0
        %v896 = vand.u32 2147483647, %v880
        %v897 = vand.u32 2147483647, %v881
        %v898 = vand.u32 2147483647, %v882
        %v899 = vand.u32 2147483647, %v883
        %v900 = vand.u32 2147483647, %v884
        %v901 = vand.u32 2147483647, %v885
        %v902 = vand.u32 2147483647, %v886
        %v903 = vand.u32 2147483647, %v887
        %v904 = vand.u32 2147483647, %v888
        %v905 = vand.u32 2147483647, %v889
        %v906 = vand.u32 2147483647, %v890
        %v907 = vand.u32 2147483647, %v891
        %v908 = vand.u32 2147483647, %v892
        %v909 = vand.u32 2147483647, %v893
        %v910 = vand.u32 2147483647, %v894
        %v911 = vand.u32 2147483647, %v895
        %v912 = vsub.f32 1.0, %v896
        %v913 = vsub.f32 1.0, %v897
        %v914 = vsub.f32 1.0, %v898
        %v915 = vsub.f32 1.0, %v899
        %v916 = vsub.f32 1.0, %v900
        %v917 = vsub.f32 1.0, %v901
        %v918 = vsub.f32 1.0, %v902
        %v919 = vsub.f32 1.0, %v903
        %v920 = vsub.f32 1.0, %v904
        %v921 = vsub.f32 1.0, %v905
        %v922 = vsub.f32 1.0, %v906
        %v923 = vsub.f32 1.0, %v907
        %v924 = vsub.f32 1.0, %v908
        %v925 = vsub.f32 1.0, %v909
        %v926 = vsub.f32 1.0, %v910
        %v927 = vsub.f32 1.0, %v911
        %v928 = vmax.f32 %v912, 0.0
        %v929 = vmax.f32 %v913, 0.0
        %v930 = vmax.f32 %v914, 0.0
        %v931 = vmax.f32 %v915, 0.0
        %v932 = vmax.f32 %v916, 0.0
        %v933 = vmax.f32 %v917, 0.0
        %v934 = vmax.f32 %v918, 0.0
        %v935 = vmax.f32 %v919, 0.0
        %v936 = vmax.f32 %v920, 0.0
        %v937 = vmax.f32 %v921, 0.0
        %v938 = vmax.f32 %v922, 0.0
        %v939 = vmax.f32 %v923, 0.0
        %v940 = vmax.f32 %v924, 0.0
        %v941 = vmax.f32 %v925, 0.0
        %v942 = vmax.f32 %v926, 0.0
        %v943 = vmax.f32 %v927, 0.0
        %v944 = vperm.slane %v701, 2
        %v945 = vmul.f32 %v928, %v944
        %v946 = vmul.f32 %v929, %v944
        %v947 = vmul.f32 %v930, %v944
        %v948 = vmul.f32 %v931, %v944
        %v949 = vmul.f32 %v932, %v944
        %v950 = vmul.f32 %v933, %v944
        %v951 = vmul.f32 %v934, %v944
        %v952 = vmul.f32 %v935, %v944
        %v953 = vmul.f32 %v936, %v944
        %v954 = vmul.f32 %v937, %v944
        %v955 = vmul.f32 %v938, %v944
        %v956 = vmul.f32 %v939, %v944
        %v957 = vmul.f32 %v940, %v944
        %v958 = vmul.f32 %v941, %v944
        %v959 = vmul.f32 %v942, %v944
        %v960 = vmul.f32 %v943, %v944
        %v961 = vadd.f32 %v864, %v945
        %v962 = vadd.f32 %v865, %v946
        %v963 = vadd.f32 %v866, %v947
        %v964 = vadd.f32 %v867, %v948
        %v965 = vadd.f32 %v868, %v949
        %v966 = vadd.f32 %v869, %v950
        %v967 = vadd.f32 %v870, %v951
        %v968 = vadd.f32 %v871, %v952
        %v969 = vadd.f32 %v872, %v953
        %v970 = vadd.f32 %v873, %v954
        %v971 = vadd.f32 %v874, %v955
        %v972 = vadd.f32 %v875, %v956
        %v973 = vadd.f32 %v876, %v957
        %v974 = vadd.f32 %v877, %v958
        %v975 = vadd.f32 %v878, %v959
        %v976 = vadd.f32 %v879, %v960
        %v977 = vsub.f32 %v685, 3.0
        %v978 = vsub.f32 %v686, 3.0
        %v979 = vsub.f32 %v687, 3.0
        %v980 = vsub.f32 %v688, 3.0
        %v981 = vsub.f32 %v689, 3.0
        %v982 = vsub.f32 %v690, 3.0
        %v983 = vsub.f32 %v691, 3.0
        %v984 = vsub.f32 %v692, 3.0
        %v985 = vsub.f32 %v693, 3.0
        %v986 = vsub.f32 %v694, 3.0
        %v987 = vsub.f32 %v695, 3.0
        %v988 = vsub.f32 %v696, 3.0
        %v989 = vsub.f32 %v697, 3.0
        %v990 = vsub.f32 %v698, 3.0
        %v991 = vsub.f32 %v699, 3.0
        %v992 = vsub.f32 %v700, 3.0
        %v993 = vand.u32 2147483647, %v977
        %v994 = vand.u32 2147483647, %v978
        %v995 = vand.u32 2147483647, %v979
        %v996 = vand.u32 2147483647, %v980
        %v997 = vand.u32 2147483647, %v981
        %v998 = vand.u32 2147483647, %v982
        %v999 = vand.u32 2147483647, %v983
        %v1000 = vand.u32 2147483647, %v984
        %v1001 = vand.u32 2147483647, %v985
        %v1002 = vand.u32 2147483647, %v986
        %v1003 = vand.u32 2147483647, %v987
        %v1004 = vand.u32 2147483647, %v988
        %v1005 = vand.u32 2147483647, %v989
        %v1006 = vand.u32 2147483647, %v990
        %v1007 = vand.u32 2147483647, %v991
        %v1008 = vand.u32 2147483647, %v992
        %v1009 = vsub.f32 1.0, %v993
        %v1010 = vsub.f32 1.0, %v994
        %v1011 = vsub.f32 1.0, %v995
        %v1012 = vsub.f32 1.0, %v996
        %v1013 = vsub.f32 1.0, %v997
        %v1014 = vsub.f32 1.0, %v998
        %v1015 = vsub.f32 1.0, %v999
        %v1016 = vsub.f32 1.0, %v1000
        %v1017 = vsub.f32 1.0, %v1001
        %v1018 = vsub.f32 1.0, %v1002
        %v1019 = vsub.f32 1.0, %v1003
        %v1020 = vsub.f32 1.0, %v1004
        %v1021 = vsub.f32 1.0, %v1005
        %v1022 = vsub.f32 1.0, %v1006
        %v1023 = vsub.f32 1.0, %v1007
        %v1024 = vsub.f32 1.0, %v1008
        %v1025 = vmax.f32 %v1009, 0.0
        %v1026 = vmax.f32 %v1010, 0.0
        %v1027 = vmax.f32 %v1011, 0.0
        %v1028 = vmax.f32 %v1012, 0.0
        %v1029 = vmax.f32 %v1013, 0.0
        %v1030 = vmax.f32 %v1014, 0.0
        %v1031 = vmax.f32 %v1015, 0.0
        %v1032 = vmax.f32 %v1016, 0.0
        %v1033 = vmax.f32 %v1017, 0.0
        %v1034 = vmax.f32 %v1018, 0.0
        %v1035 = vmax.f32 %v1019, 0.0
        %v1036 = vmax.f32 %v1020, 0.0
        %v1037 = vmax.f32 %v1021, 0.0
        %v1038 = vmax.f32 %v1022, 0.0
        %v1039 = vmax.f32 %v1023, 0.0
        %v1040 = vmax.f32 %v1024, 0.0
        %v1041 = vperm.slane %v701, 3
        %v1042 = vmul.f32 %v1025, %v1041
        %v1043 = vmul.f32 %v1026, %v1041
        %v1044 = vmul.f32 %v1027, %v1041
        %v1045 = vmul.f32 %v1028, %v1041
        %v1046 = vmul.f32 %v1029, %v1041
        %v1047 = vmul.f32 %v1030, %v1041
        %v1048 = vmul.f32 %v1031, %v1041
        %v1049 = vmul.f32 %v1032, %v1041
        %v1050 = vmul.f32 %v1033, %v1041
        %v1051 = vmul.f32 %v1034, %v1041
        %v1052 = vmul.f32 %v1035, %v1041
        %v1053 = vmul.f32 %v1036, %v1041
        %v1054 = vmul.f32 %v1037, %v1041
        %v1055 = vmul.f32 %v1038, %v1041
        %v1056 = vmul.f32 %v1039, %v1041
        %v1057 = vmul.f32 %v1040, %v1041
        %v1058 = vadd.f32 %v961, %v1042
        %v1059 = vadd.f32 %v962, %v1043
        %v1060 = vadd.f32 %v963, %v1044
        %v1061 = vadd.f32 %v964, %v1045
        %v1062 = vadd.f32 %v965, %v1046
        %v1063 = vadd.f32 %v966, %v1047
        %v1064 = vadd.f32 %v967, %v1048
        %v1065 = vadd.f32 %v968, %v1049
        %v1066 = vadd.f32 %v969, %v1050
        %v1067 = vadd.f32 %v970, %v1051
        %v1068 = vadd.f32 %v971, %v1052
        %v1069 = vadd.f32 %v972, %v1053
        %v1070 = vadd.f32 %v973, %v1054
        %v1071 = vadd.f32 %v974, %v1055
        %v1072 = vadd.f32 %v975, %v1056
        %v1073 = vadd.f32 %v976, %v1057
        %v1074 = vsub.f32 %v685, 4.0
        %v1075 = vsub.f32 %v686, 4.0
        %v1076 = vsub.f32 %v687, 4.0
        %v1077 = vsub.f32 %v688, 4.0
        %v1078 = vsub.f32 %v689, 4.0
        %v1079 = vsub.f32 %v690, 4.0
        %v1080 = vsub.f32 %v691, 4.0
        %v1081 = vsub.f32 %v692, 4.0
        %v1082 = vsub.f32 %v693, 4.0
        %v1083 = vsub.f32 %v694, 4.0
        %v1084 = vsub.f32 %v695, 4.0
        %v1085 = vsub.f32 %v696, 4.0
        %v1086 = vsub.f32 %v697, 4.0
        %v1087 = vsub.f32 %v698, 4.0
        %v1088 = vsub.f32 %v699, 4.0
        %v1089 = vsub.f32 %v700, 4.0
        %v1090 = vand.u32 2147483647, %v1074
        %v1091 = vand.u32 2147483647, %v1075
        %v1092 = vand.u32 2147483647, %v1076
        %v1093 = vand.u32 2147483647, %v1077
        %v1094 = vand.u32 2147483647, %v1078
        %v1095 = vand.u32 2147483647, %v1079
        %v1096 = vand.u32 2147483647, %v1080
        %v1097 = vand.u32 2147483647, %v1081
        %v1098 = vand.u32 2147483647, %v1082
        %v1099 = vand.u32 2147483647, %v1083
        %v1100 = vand.u32 2147483647, %v1084
        %v1101 = vand.u32 2147483647, %v1085
        %v1102 = vand.u32 2147483647, %v1086
        %v1103 = vand.u32 2147483647, %v1087
        %v1104 = vand.u32 2147483647, %v1088
        %v1105 = vand.u32 2147483647, %v1089
        %v1106 = vsub.f32 1.0, %v1090
        %v1107 = vsub.f32 1.0, %v1091
        %v1108 = vsub.f32 1.0, %v1092
        %v1109 = vsub.f32 1.0, %v1093
        %v1110 = vsub.f32 1.0, %v1094
        %v1111 = vsub.f32 1.0, %v1095
        %v1112 = vsub.f32 1.0, %v1096
        %v1113 = vsub.f32 1.0, %v1097
        %v1114 = vsub.f32 1.0, %v1098
        %v1115 = vsub.f32 1.0, %v1099
        %v1116 = vsub.f32 1.0, %v1100
        %v1117 = vsub.f32 1.0, %v1101
        %v1118 = vsub.f32 1.0, %v1102
        %v1119 = vsub.f32 1.0, %v1103
        %v1120 = vsub.f32 1.0, %v1104
        %v1121 = vsub.f32 1.0, %v1105
        %v1122 = vmax.f32 %v1106, 0.0
        %v1123 = vmax.f32 %v1107, 0.0
        %v1124 = vmax.f32 %v1108, 0.0
        %v1125 = vmax.f32 %v1109, 0.0
        %v1126 = vmax.f32 %v1110, 0.0
        %v1127 = vmax.f32 %v1111, 0.0
        %v1128 = vmax.f32 %v1112, 0.0
        %v1129 = vmax.f32 %v1113, 0.0
        %v1130 = vmax.f32 %v1114, 0.0
        %v1131 = vmax.f32 %v1115, 0.0
        %v1132 = vmax.f32 %v1116, 0.0
        %v1133 = vmax.f32 %v1117, 0.0
        %v1134 = vmax.f32 %v1118, 0.0
        %v1135 = vmax.f32 %v1119, 0.0
        %v1136 = vmax.f32 %v1120, 0.0
        %v1137 = vmax.f32 %v1121, 0.0
        %v1138 = vperm.slane %v701, 4
        %v1139 = vmul.f32 %v1122, %v1138
        %v1140 = vmul.f32 %v1123, %v1138
        %v1141 = vmul.f32 %v1124, %v1138
        %v1142 = vmul.f32 %v1125, %v1138
        %v1143 = vmul.f32 %v1126, %v1138
        %v1144 = vmul.f32 %v1127, %v1138
        %v1145 = vmul.f32 %v1128, %v1138
        %v1146 = vmul.f32 %v1129, %v1138
        %v1147 = vmul.f32 %v1130, %v1138
        %v1148 = vmul.f32 %v1131, %v1138
        %v1149 = vmul.f32 %v1132, %v1138
        %v1150 = vmul.f32 %v1133, %v1138
        %v1151 = vmul.f32 %v1134, %v1138
        %v1152 = vmul.f32 %v1135, %v1138
        %v1153 = vmul.f32 %v1136, %v1138
        %v1154 = vmul.f32 %v1137, %v1138
        %v1155 = vadd.f32 %v1058, %v1139
        %v1156 = vadd.f32 %v1059, %v1140
        %v1157 = vadd.f32 %v1060, %v1141
        %v1158 = vadd.f32 %v1061, %v1142
        %v1159 = vadd.f32 %v1062, %v1143
        %v1160 = vadd.f32 %v1063, %v1144
        %v1161 = vadd.f32 %v1064, %v1145
        %v1162 = vadd.f32 %v1065, %v1146
        %v1163 = vadd.f32 %v1066, %v1147
        %v1164 = vadd.f32 %v1067, %v1148
        %v1165 = vadd.f32 %v1068, %v1149
        %v1166 = vadd.f32 %v1069, %v1150
        %v1167 = vadd.f32 %v1070, %v1151
        %v1168 = vadd.f32 %v1071, %v1152
        %v1169 = vadd.f32 %v1072, %v1153
        %v1170 = vadd.f32 %v1073, %v1154
        %v1171 = vsub.f32 %v685, 5.0
        %v1172 = vsub.f32 %v686, 5.0
        %v1173 = vsub.f32 %v687, 5.0
        %v1174 = vsub.f32 %v688, 5.0
        %v1175 = vsub.f32 %v689, 5.0
        %v1176 = vsub.f32 %v690, 5.0
        %v1177 = vsub.f32 %v691, 5.0
        %v1178 = vsub.f32 %v692, 5.0
        %v1179 = vsub.f32 %v693, 5.0
        %v1180 = vsub.f32 %v694, 5.0
        %v1181 = vsub.f32 %v695, 5.0
        %v1182 = vsub.f32 %v696, 5.0
        %v1183 = vsub.f32 %v697, 5.0
        %v1184 = vsub.f32 %v698, 5.0
        %v1185 = vsub.f32 %v699, 5.0
        %v1186 = vsub.f32 %v700, 5.0
        %v1187 = vand.u32 2147483647, %v1171
        %v1188 = vand.u32 2147483647, %v1172
        %v1189 = vand.u32 2147483647, %v1173
        %v1190 = vand.u32 2147483647, %v1174
        %v1191 = vand.u32 2147483647, %v1175
        %v1192 = vand.u32 2147483647, %v1176
        %v1193 = vand.u32 2147483647, %v1177
        %v1194 = vand.u32 2147483647, %v1178
        %v1195 = vand.u32 2147483647, %v1179
        %v1196 = vand.u32 2147483647, %v1180
        %v1197 = vand.u32 2147483647, %v1181
        %v1198 = vand.u32 2147483647, %v1182
        %v1199 = vand.u32 2147483647, %v1183
        %v1200 = vand.u32 2147483647, %v1184
        %v1201 = vand.u32 2147483647, %v1185
        %v1202 = vand.u32 2147483647, %v1186
        %v1203 = vsub.f32 1.0, %v1187
        %v1204 = vsub.f32 1.0, %v1188
        %v1205 = vsub.f32 1.0, %v1189
        %v1206 = vsub.f32 1.0, %v1190
        %v1207 = vsub.f32 1.0, %v1191
        %v1208 = vsub.f32 1.0, %v1192
        %v1209 = vsub.f32 1.0, %v1193
        %v1210 = vsub.f32 1.0, %v1194
        %v1211 = vsub.f32 1.0, %v1195
        %v1212 = vsub.f32 1.0, %v1196
        %v1213 = vsub.f32 1.0, %v1197
        %v1214 = vsub.f32 1.0, %v1198
        %v1215 = vsub.f32 1.0, %v1199
        %v1216 = vsub.f32 1.0, %v1200
        %v1217 = vsub.f32 1.0, %v1201
        %v1218 = vsub.f32 1.0, %v1202
        %v1219 = vmax.f32 %v1203, 0.0
        %v1220 = vmax.f32 %v1204, 0.0
        %v1221 = vmax.f32 %v1205, 0.0
        %v1222 = vmax.f32 %v1206, 0.0
        %v1223 = vmax.f32 %v1207, 0.0
        %v1224 = vmax.f32 %v1208, 0.0
        %v1225 = vmax.f32 %v1209, 0.0
        %v1226 = vmax.f32 %v1210, 0.0
        %v1227 = vmax.f32 %v1211, 0.0
        %v1228 = vmax.f32 %v1212, 0.0
        %v1229 = vmax.f32 %v1213, 0.0
        %v1230 = vmax.f32 %v1214, 0.0
        %v1231 = vmax.f32 %v1215, 0.0
        %v1232 = vmax.f32 %v1216, 0.0
        %v1233 = vmax.f32 %v1217, 0.0
        %v1234 = vmax.f32 %v1218, 0.0
        %v1235 = vperm.slane %v701, 5
        %v1236 = vmul.f32 %v1219, %v1235
        %v1237 = vmul.f32 %v1220, %v1235
        %v1238 = vmul.f32 %v1221, %v1235
        %v1239 = vmul.f32 %v1222, %v1235
        %v1240 = vmul.f32 %v1223, %v1235
        %v1241 = vmul.f32 %v1224, %v1235
        %v1242 = vmul.f32 %v1225, %v1235
        %v1243 = vmul.f32 %v1226, %v1235
        %v1244 = vmul.f32 %v1227, %v1235
        %v1245 = vmul.f32 %v1228, %v1235
        %v1246 = vmul.f32 %v1229, %v1235
        %v1247 = vmul.f32 %v1230, %v1235
        %v1248 = vmul.f32 %v1231, %v1235
        %v1249 = vmul.f32 %v1232, %v1235
        %v1250 = vmul.f32 %v1233, %v1235
        %v1251 = vmul.f32 %v1234, %v1235
        %v1252 = vadd.f32 %v1155, %v1236
        %v1253 = vadd.f32 %v1156, %v1237
        %v1254 = vadd.f32 %v1157, %v1238
        %v1255 = vadd.f32 %v1158, %v1239
        %v1256 = vadd.f32 %v1159, %v1240
        %v1257 = vadd.f32 %v1160, %v1241
        %v1258 = vadd.f32 %v1161, %v1242
        %v1259 = vadd.f32 %v1162, %v1243
        %v1260 = vadd.f32 %v1163, %v1244
        %v1261 = vadd.f32 %v1164, %v1245
        %v1262 = vadd.f32 %v1165, %v1246
        %v1263 = vadd.f32 %v1166, %v1247
        %v1264 = vadd.f32 %v1167, %v1248
        %v1265 = vadd.f32 %v1168, %v1249
        %v1266 = vadd.f32 %v1169, %v1250
        %v1267 = vadd.f32 %v1170, %v1251
        %v1284 = vrot.slane %v1253, 7
        %vm1285 = vcmask 1041409
        %v1286 = vsel %vm1285, %v1284, %v1252
        %v1287 = vrot.slane %v1254, 6
        %vm1288 = vcmask 1042434
        %v1289 = vsel %vm1288, %v1287, %v1286
        %v1290 = vrot.slane %v1255, 5
        %vm1291 = vcmask 1043459
        %v1292 = vsel %vm1291, %v1290, %v1289
        %v1293 = vrot.slane %v1256, 4
        %vm1294 = vcmask 1044484
        %v1295 = vsel %vm1294, %v1293, %v1292
        %v1296 = vrot.slane %v1257, 3
        %vm1297 = vcmask 1045509
        %v1298 = vsel %vm1297, %v1296, %v1295
        %v1299 = vrot.slane %v1258, 2
        %vm1300 = vcmask 1046534
        %v1301 = vsel %vm1300, %v1299, %v1298
        %v1302 = vrot.slane %v1259, 1
        %vm1303 = vcmask 1047559
        %v1304 = vsel %vm1303, %v1302, %v1301
        %v1305 = vrot.slane %v1261, 7
        %v1306 = vsel %vm1285, %v1305, %v1260
        %v1307 = vrot.slane %v1262, 6
        %v1308 = vsel %vm1288, %v1307, %v1306
        %v1309 = vrot.slane %v1263, 5
        %v1310 = vsel %vm1291, %v1309, %v1308
        %v1311 = vrot.slane %v1264, 4
        %v1312 = vsel %vm1294, %v1311, %v1310
        %v1313 = vrot.slane %v1265, 3
        %v1314 = vsel %vm1297, %v1313, %v1312
        %v1315 = vrot.slane %v1266, 2
        %v1316 = vsel %vm1300, %v1315, %v1314
        %v1317 = vrot.slane %v1267, 1
        %v1318 = vsel %vm1303, %v1317, %v1316
        %v1321 = vmul.f32 %v183, %v1304
        %v1322 = vmul.f32 %v184, %v1318
        %v1323 = vsel %vm524, %v1321, 0.0
        %v1324 = vsel %vm524, %v1322, 0.0
        %v1325 = vadd.f32 %v1323, %v1324
        %v1326 = vrot.slane %v1325, 4
        %v1327 = vadd.f32 %v1325, %v1326
        %v1328 = vrot.slane %v1327, 2
        %v1329 = vadd.f32 %v1327, %v1328
        %v1330 = vrot.slane %v1329, 1
        %v1331 = vadd.f32 %v1329, %v1330
        %vm1332 = vcmask 24576
        %1333 = vst.msk [vmem:[%s170] sm:$0x1] %vm1332, %v1331
        %s1334 = sand.u32 %s92, 1
        %s1335 = scalar_lea.sflag [#allocation3], %s1334
        %s1336 = sand.u32 %s92, 1
        %s1337 = scalar_lea.vmem [#allocation2], %s1336
        // Predicated region
        $region29: #{tpu_custom_call.1} parent=27 // pred_check
          %p1338 = pneg %p102
        $region30: #{tpu_custom_call.1} parent=27 // pred_check_branch
          %1340 = sbr.rel (%p1338) target = $region32
        $region31: #{tpu_custom_call.1} parent=27 // pred_region
          %1342 = vsyncadd %s1335, 0
          %s1343 = sadd.s32 %s21, %s20
          %s1344 = scalar_lea.hbm %s2, %s1343
          %s1346 = sshll.u32 %s1337, 4
          %s1347 = int_to_ptr.vmem [resolvable:$true] %s1346
          %s1348 = sshll.u32 %s1344, 4
          %s1349 = int_to_ptr.hbm [resolvable:$true] %s1348
          %1351 = dma.vmem_to_hbm [thread:$0]  %s1347, 16, %s1349, %s1335
        $region32: #{tpu_custom_call.1} parent=27 // pred_fallthru
          _
      $region28: #{tpu_custom_call.1} parent=5 // pred_fallthru
        _
      %p1352 = scmp.le.s32.totalorder 2, %s11
      // Predicated region
      $region33: #{tpu_custom_call.1} parent=5 // pred_check
        %p1353 = pneg %p1352
      $region34: #{tpu_custom_call.1} parent=5 // pred_check_branch
        %1355 = sbr.rel (%p1353) target = $region36
      $region35: #{tpu_custom_call.1} parent=5 // pred_region
        %s1356 = ssub.s32 %s11, 2
        // Predicated region
        $region37: #{tpu_custom_call.1} parent=35 // pred_check
          %p1357 = pneg %p108
        $region38: #{tpu_custom_call.1} parent=35 // pred_check_branch
          %1359 = sbr.rel (%p1357) target = $region40
        $region39: #{tpu_custom_call.1} parent=35 // pred_region
          %s1360 = sand.u32 %s93, 1
          %s1361 = scalar_lea.sflag [#allocation3], %s1360
          %s1362 = sand.u32 %s93, 1
          %s1363 = scalar_lea.vmem [#allocation2], %s1362
          %1365 = dma.done %s1361, 16
        $region40: #{tpu_custom_call.1} parent=35 // pred_fallthru
          _
      $region36: #{tpu_custom_call.1} parent=5 // pred_fallthru
        _
    $region6: #{tpu_custom_call.1} parent=1 // loop_footer
      %s15 = sadd.s32 1, %s11
    $region7: #{tpu_custom_call.1} parent=1 // loop_footer_branch
      %10 = sbr.rel target = $region3
    $region8: #{tpu_custom_call.1} parent=1 // loop_exit
      _
    %1366 = vsyncpa [#allocation3], 1
    %s1367 = scalar_lea.sflag [#allocation3], 1
    %1368 = vsyncpa %s1367, 1

</llo_original>
